<compile_context>
chip_gen: v7x
topology: tpu7x:2x2x1
jax: 0.10.0
libtpu: 0.0.40
codegen_flags: <defaults>
</compile_context>

<pallas_src>
import jax
import jax.numpy as jnp
from jax.experimental import pallas as pl
from jax.experimental.pallas import tpu as pltpu


def _round_up(n, m):
    return ((n + m - 1) // m) * m


def _device_kind():
    try:
        return jax.devices()[0].device_kind.lower()
    except Exception:
        return ""


def _is_v7x():
    return "v7" in _device_kind()


def _generation_defaults():
    """(tm, ti, vmem_limit_bytes) per TPU generation.

    Chosen so the per-step arithmetic intensity clears the compute/HBM balance
    point of each generation while the double-buffered tiles fit VMEM:
      v6e: 1024/512 -> ~72 MiB of buffers (128 MiB VMEM), ~975 FLOP/byte.
      v5e:  512/512 -> ~48 MiB of buffers, ~490 FLOP/byte (balance ~240).
      v7x:  512/512 -> ~48 MiB of buffers, stays under the 64 MiB/TC VMEM.
    """
    kind = _device_kind()
    if "v6" in kind:
        return 1024, 512, 100 * 1024 * 1024
    if "v5" in kind:
        return 512, 512, 64 * 1024 * 1024
    # v7x and unknown chips: conservative settings that fit everywhere.
    return 512, 512, 56 * 1024 * 1024


def _llama_mlp_kernel(x_ref, wgu_ref, wd_ref, o_ref, acc_ref):
    # Grid: (c = reduction split, i = row tile, j = I tile)  -- j last.
    # x_ref:   (tm, H)     bf16 input rows (resident across the j axis)
    # wgu_ref: (H, 2*ti)   bf16 fused [gate_tile | up_tile] weight slab
    # wd_ref:  (ti, H)     bf16 down-proj weight tile
    # o_ref:   (tm, H)     output tile (written on the last j step)
    # acc_ref: (tm, H) f32 VMEM accumulator, resident across the j axis
    j = pl.program_id(2)

    @pl.when(j == 0)
    def _():
        acc_ref[...] = jnp.zeros_like(acc_ref)

    # One fused gate+up matmul on the MXU with f32 accumulation.
    gu = jnp.dot(x_ref[...], wgu_ref[...], preferred_element_type=jnp.float32)
    ti = wd_ref.shape[0]
    g = gu[:, :ti]
    u = gu[:, ti:]
    # SiLU epilogue in f32 (VPU/EUP work hides under the MXU).
    h = (g * jax.nn.sigmoid(g)) * u

    acc_ref[...] += jnp.dot(h.astype(wd_ref.dtype), wd_ref[...],
                            preferred_element_type=jnp.float32)

    @pl.when(j == pl.num_programs(2) - 1)
    def _():
        o_ref[...] = acc_ref[...].astype(o_ref.dtype)


def pack_llama_mlp_weights(w_gate, w_up, w_down, *, ti=None,
                           compute_dtype=jnp.bfloat16):
    """One-time weight packing (call at model-load time, NOT per forward).

    w_gate/w_up: (H, I), w_down: (I, H), stored as (in_features, out_features)
    i.e. the transpose of torch's Linear weight layout.

    Returns (wgu, wd, ti):
      wgu: (H, nj*2*ti) bf16 fused gate|up weight, interleaved per I-tile so
           block j is the contiguous slab [gate_tile_j | up_tile_j].
      wd:  (I_pad, H)   bf16 padded down-proj weight.
    """
    H, I = w_gate.shape
    if ti is None:
        ti = _generation_defaults()[1]
    ti = min(ti, _round_up(I, 128))          # keep the I tile lane-aligned
    I_pad = _round_up(I, ti)
    nj = I_pad // ti

    wg = w_gate.astype(compute_dtype)
    wu = w_up.astype(compute_dtype)
    wd = w_down.astype(compute_dtype)
    if I_pad != I:
        wg = jnp.pad(wg, ((0, 0), (0, I_pad - I)))
        wu = jnp.pad(wu, ((0, 0), (0, I_pad - I)))
        wd = jnp.pad(wd, ((0, I_pad - I), (0, 0)))

    wgu = jnp.concatenate(
        [wg.reshape(H, nj, ti), wu.reshape(H, nj, ti)], axis=2
    ).reshape(H, nj * 2 * ti)
    return wgu, wd, ti


def llama_mlp_pallas_packed(x, wgu, wd, *, ti, tm=None, nsplit=None,
                            compute_dtype=jnp.bfloat16,
                            vmem_limit_bytes=None):
    """x: (B, S, H); wgu/wd from pack_llama_mlp_weights. Returns (B, S, H)."""
    B, S, H = x.shape
    I_pad = wd.shape[0]
    assert wgu.shape == (H, 2 * I_pad)
    assert I_pad % ti == 0
    nj = I_pad // ti
    out_dtype = x.dtype

    gen_tm, _, gen_vmem = _generation_defaults()
    if tm is None:
        tm = gen_tm
    if vmem_limit_bytes is None:
        vmem_limit_bytes = gen_vmem

    M = B * S
    tm = min(tm, _round_up(M, 16))       # bf16-friendly clip for tiny decode M
    M_pad = _round_up(M, tm)
    n_rows = M_pad // tm

    if nsplit is None:
        # Dual-TC reduction split: only useful on v7x (2 TCs) when the row
        # axis is too small to feed both cores (decode-like shapes).
        nsplit = 2 if (_is_v7x() and n_rows == 1 and nj >= 2 and nj % 2 == 0) else 1
    assert nj % nsplit == 0
    njs = nj // nsplit

    # Only the activations are cast/padded per call; weights are pre-packed.
    xc = x.reshape(M, H).astype(compute_dtype)
    if M_pad != M:
        xc = jnp.pad(xc, ((0, M_pad - M), (0, 0)))

    # With a reduction split, each TC writes an f32 partial; summed below.
    kernel_out_dtype = out_dtype if nsplit == 1 else jnp.float32

    partial = pl.pallas_call(
        _llama_mlp_kernel,
        out_shape=jax.ShapeDtypeStruct((nsplit, M_pad, H), kernel_out_dtype),
        grid_spec=pltpu.PrefetchScalarGridSpec(
            num_scalar_prefetch=0,
            grid=(nsplit, n_rows, njs),          # I reduction is the last axis
            in_specs=[
                pl.BlockSpec((tm, H), lambda c, i, j: (i, 0)),       # x rows
                pl.BlockSpec((H, 2 * ti),
                             lambda c, i, j: (0, c * njs + j)),      # gate|up
                pl.BlockSpec((ti, H),
                             lambda c, i, j: (c * njs + j, 0)),      # down
            ],
            out_specs=pl.BlockSpec((pl.Squeezed(), tm, H),
                                   lambda c, i, j: (c, i, 0)),
            scratch_shapes=[pltpu.VMEM((tm, H), jnp.float32)],
        ),
        compiler_params=pltpu.CompilerParams(
            dimension_semantics=("parallel", "parallel", "arbitrary"),
            vmem_limit_bytes=vmem_limit_bytes),
    )(xc, wgu, wd)

    if nsplit == 1:
        out2d = partial[0]
    else:
        out2d = partial.sum(axis=0).astype(out_dtype)
    return out2d[:M].reshape(B, S, H)


def llama_mlp_pallas(x, w_gate, w_up, w_down, *, tm=None, ti=None,
                     compute_dtype=jnp.bfloat16, vmem_limit_bytes=None):
    """Convenience wrapper that packs weights then calls the packed kernel.

    For production use, call pack_llama_mlp_weights() once at load time and
    llama_mlp_pallas_packed() per forward to avoid re-streaming the f32
    weights through HBM on every call.
    """
    wgu, wd, ti = pack_llama_mlp_weights(w_gate, w_up, w_down, ti=ti,
                                         compute_dtype=compute_dtype)
    return llama_mlp_pallas_packed(x, wgu, wd, ti=ti, tm=tm,
                                   compute_dtype=compute_dtype,
                                   vmem_limit_bytes=vmem_limit_bytes)


def llama_mlp_reference(x, w_gate, w_up, w_down, compute_dtype=jnp.bfloat16):
    """Pure-JAX reference using the same bf16-in / f32-accumulate recipe."""
    B, S, H = x.shape
    xb = x.reshape(-1, H).astype(compute_dtype)
    g = jnp.dot(xb, w_gate.astype(compute_dtype),
                preferred_element_type=jnp.float32)
    u = jnp.dot(xb, w_up.astype(compute_dtype),
                preferred_element_type=jnp.float32)
    h = (g * jax.nn.sigmoid(g)) * u
    out = jnp.dot(h.astype(compute_dtype), w_down.astype(compute_dtype),
                  preferred_element_type=jnp.float32)
    return out.reshape(B, S, H).astype(x.dtype)


if __name__ == "__main__":
    # Small, MLP-consistent demo shapes: batch=2, seq=8, hidden=128, interm=256
    B, S, H, I = 2, 8, 128, 256

    key = jax.random.PRNGKey(0)
    kx, kg, ku, kd = jax.random.split(key, 4)
    x = jax.random.normal(kx, (B, S, H), dtype=jnp.float32)
    # Deterministic synthetic weights, stored as (in_features, out_features).
    w_gate = jax.random.normal(kg, (H, I), dtype=jnp.float32) * 0.02
    w_up   = jax.random.normal(ku, (H, I), dtype=jnp.float32) * 0.02
    w_down = jax.random.normal(kd, (I, H), dtype=jnp.float32) * 0.02

    # One-time weight packing (done at model-load time in real use).
    wgu, wd, ti = pack_llama_mlp_weights(w_gate, w_up, w_down)

    out = llama_mlp_pallas_packed(x, wgu, wd, ti=ti)
    out = jax.block_until_ready(out)

    # Also exercise the convenience (pack-per-call) path.
    out2 = jax.block_until_ready(llama_mlp_pallas(x, w_gate, w_up, w_down))

    ref = llama_mlp_reference(x, w_gate, w_up, w_down)
    assert out.shape == (B, S, H)
    assert jnp.allclose(out, ref, atol=1e-2, rtol=1e-2), "mismatch vs reference"
    assert jnp.allclose(out2, ref, atol=1e-2, rtol=1e-2), "mismatch vs reference"

    print("KERNEL_OK")
</pallas_src>

<mosaic_0001>
module attributes {stable_mosaic.version = 11 : i64} {
  func.func @_llama_mlp_kernel(%arg0: i32, %arg1: i32, %arg2: i32, %arg3: memref<16x128xbf16, #tpu.memory_space<vmem>>, %arg4: memref<128x512xbf16, #tpu.memory_space<vmem>>, %arg5: memref<256x128xbf16, #tpu.memory_space<vmem>>, %arg6: memref<1x16x128xf32, #tpu.memory_space<vmem>>, %arg7: memref<16x128xf32, #tpu.memory_space<vmem>>) attributes {dimension_semantics = [#tpu.dimension_semantics<parallel>, #tpu.dimension_semantics<parallel>, #tpu.dimension_semantics<arbitrary>], iteration_bounds = array<i64: 1, 1, 1>, scalar_prefetch = 0 : i64, scratch_operands = 1 : i64, tpu.core_type = #tpu.core_type<tc>, window_params = [{transform_indices = @transform_0, window_bounds = array<i64: 16, 128>}, {transform_indices = @transform_1, window_bounds = array<i64: 128, 512>}, {transform_indices = @transform_2, window_bounds = array<i64: 256, 128>}, {transform_indices = @transform_3, window_bounds = array<i64: 1, 16, 128>}]} {
    %c0_i32 = arith.constant 0 : i32
    %0 = arith.cmpi eq, %arg2, %c0_i32 : i32
    %1 = arith.extui %0 : i1 to i32
    %c0_i32_0 = arith.constant 0 : i32
    %2 = arith.cmpi ne, %1, %c0_i32_0 : i32
    scf.if %2 {
      %cst_14 = arith.constant 0.000000e+00 : f32
      %24 = vector.broadcast %cst_14 : f32 to vector<16x128xf32>
      %c0_15 = arith.constant 0 : index
      %c0_16 = arith.constant 0 : index
      %25 = vector.load %arg7[%c0_15, %c0_16] : memref<16x128xf32, #tpu.memory_space<vmem>>, vector<16x128xf32>
      tpu.vector_store %arg7[%c0_15, %c0_16], %24 {strides = array<i32>} : memref<16x128xf32, #tpu.memory_space<vmem>>, vector<16x128xf32>,
    } else {
    }
    %c0 = arith.constant 0 : index
    %c0_1 = arith.constant 0 : index
    %3 = vector.load %arg3[%c0, %c0_1] : memref<16x128xbf16, #tpu.memory_space<vmem>>, vector<16x128xbf16>
    %c0_2 = arith.constant 0 : index
    %c0_3 = arith.constant 0 : index
    %4 = vector.load %arg4[%c0_2, %c0_3] : memref<128x512xbf16, #tpu.memory_space<vmem>>, vector<128x512xbf16>
    %cst = arith.constant dense<0.000000e+00> : vector<16x512xf32>
    %5 = tpu.matmul %3, %4, %cst {dimension_numbers = #tpu.dot_dimension_numbers<[1], [0], [0], [1], [0, 0, 1, 1], [], []>} : vector<16x128xbf16>, vector<128x512xbf16>, vector<16x512xf32> -> vector<16x512xf32>
    %6 = vector.extract_strided_slice %5 {offsets = [0, 0], sizes = [16, 256], strides = [1, 1]} : vector<16x512xf32> to vector<16x256xf32>
    %7 = vector.extract_strided_slice %5 {offsets = [0, 256], sizes = [16, 256], strides = [1, 1]} : vector<16x512xf32> to vector<16x256xf32>
    %8 = arith.negf %6 : vector<16x256xf32>
    %9 = math.exp %8 : vector<16x256xf32>
    %cst_4 = arith.constant 1.000000e+00 : f32
    %10 = vector.broadcast %cst_4 : f32 to vector<16x256xf32>
    %11 = arith.addf %10, %9 : vector<16x256xf32>
    %12 = arith.divf %10, %11 : vector<16x256xf32>
    %13 = arith.mulf %6, %12 : vector<16x256xf32>
    %14 = arith.mulf %13, %7 : vector<16x256xf32>
    %c0_5 = arith.constant 0 : index
    %c0_6 = arith.constant 0 : index
    %15 = vector.load %arg7[%c0_5, %c0_6] : memref<16x128xf32, #tpu.memory_space<vmem>>, vector<16x128xf32>
    %16 = arith.truncf %14 : vector<16x256xf32> to vector<16x256xbf16>
    %c0_7 = arith.constant 0 : index
    %c0_8 = arith.constant 0 : index
    %17 = vector.load %arg5[%c0_7, %c0_8] : memref<256x128xbf16, #tpu.memory_space<vmem>>, vector<256x128xbf16>
    %cst_9 = arith.constant dense<0.000000e+00> : vector<16x128xf32>
    %18 = tpu.matmul %16, %17, %cst_9 {dimension_numbers = #tpu.dot_dimension_numbers<[1], [0], [0], [1], [0, 0, 1, 1], [], []>} : vector<16x256xbf16>, vector<256x128xbf16>, vector<16x128xf32> -> vector<16x128xf32>
    %19 = arith.addf %15, %18 : vector<16x128xf32>
    %c0_10 = arith.constant 0 : index
    %c0_11 = arith.constant 0 : index
    %20 = vector.load %arg7[%c0_10, %c0_11] : memref<16x128xf32, #tpu.memory_space<vmem>>, vector<16x128xf32>
    tpu.vector_store %arg7[%c0_10, %c0_11], %19 {strides = array<i32>} : memref<16x128xf32, #tpu.memory_space<vmem>>, vector<16x128xf32>,
    %c0_i32_12 = arith.constant 0 : i32
    %21 = arith.cmpi eq, %arg2, %c0_i32_12 : i32
    %22 = arith.extui %21 : i1 to i32
    %c0_i32_13 = arith.constant 0 : i32
    %23 = arith.cmpi ne, %22, %c0_i32_13 : i32
    scf.if %23 {
      %c0_14 = arith.constant 0 : index
      %c0_15 = arith.constant 0 : index
      %24 = vector.load %arg7[%c0_14, %c0_15] : memref<16x128xf32, #tpu.memory_space<vmem>>, vector<16x128xf32>
      %c0_16 = arith.constant 0 : index
      %c0_17 = arith.constant 0 : index
      %c0_18 = arith.constant 0 : index
      %25 = vector.load %arg6[%c0_16, %c0_17, %c0_18] : memref<1x16x128xf32, #tpu.memory_space<vmem>>, vector<1x16x128xf32>
      %26 = vector.shape_cast %25 : vector<1x16x128xf32> to vector<16x128xf32>
      %27 = vector.shape_cast %24 : vector<16x128xf32> to vector<1x16x128xf32>
      tpu.vector_store %arg6[%c0_16, %c0_17, %c0_18], %27 {strides = array<i32>} : memref<1x16x128xf32, #tpu.memory_space<vmem>>, vector<1x16x128xf32>,
    } else {
    }
    return
  }
  func.func @transform_0(%arg0: i32, %arg1: i32, %arg2: i32) -> (i32, i32) {
    %c0_i32 = arith.constant 0 : i32
    %c0_i32_0 = arith.constant 0 : i32
    return %arg1, %c0_i32 : i32, i32
  }
  func.func @transform_1(%arg0: i32, %arg1: i32, %arg2: i32) -> (i32, i32) {
    %c1_i32 = arith.constant 1 : i32
    %0 = arith.muli %arg0, %c1_i32 : i32
    %1 = arith.addi %0, %arg2 : i32
    %c0_i32 = arith.constant 0 : i32
    %c0_i32_0 = arith.constant 0 : i32
    return %c0_i32, %1 : i32, i32
  }
  func.func @transform_2(%arg0: i32, %arg1: i32, %arg2: i32) -> (i32, i32) {
    %c1_i32 = arith.constant 1 : i32
    %0 = arith.muli %arg0, %c1_i32 : i32
    %1 = arith.addi %0, %arg2 : i32
    %c0_i32 = arith.constant 0 : i32
    %c0_i32_0 = arith.constant 0 : i32
    return %1, %c0_i32 : i32, i32
  }
  func.func @transform_3(%arg0: i32, %arg1: i32, %arg2: i32) -> (i32, i32, i32) {
    %c0_i32 = arith.constant 0 : i32
    %c0_i32_0 = arith.constant 0 : i32
    return %arg0, %arg1, %c0_i32 : i32, i32, i32
  }
}

</mosaic_0001>

<llo_original>
// kernel: tpu_custom_call.1
$region0: #{tpu_custom_call.1}
  #allocation0 [shape = 'u32[]', space=smem, size = 0x4, offset = 0x4, fixed_abs, tag = 'smem constant byte address 0x4 - core index']
  #allocation1 [shape = 'u32[144,128]{1,0:T(1,128)}', space=vmem, size = 0x12000, scoped, tag = 'internal scratch']
  #allocation2 [shape = 'f32[16,128]{1,0:T(8,128)}', space=vmem, size = 0x2000, scoped, tag = 'scratch operand']
  %s0 = inlined_call_operand.hbm [shape: bf16[16,128], index: 0, kind: input, shape index: {}]
  %s1 = inlined_call_operand.hbm [shape: bf16[128,512], index: 1, kind: input, shape index: {}]
  %s2 = inlined_call_operand.hbm [shape: bf16[256,128], index: 2, kind: input, shape index: {}]
  %s3 = inlined_call_operand.hbm [shape: f32[1,16,128], index: 3, kind: output, shape index: {}]
  %s4 = sld [smem:[#allocation0]]
  $region42: #{tpu_custom_call.1} parent=0
    _
  %s6 = ssub.s32 1, %s4
  %s7 = scalar_select 0, %s6, %s4
  $region1: #{tpu_custom_call.1} parent=0
    #allocation3 [shape = 'u8[4096]{0}', space=vmem, size = 0x1000, scoped, tag = 'input window, operand 0, single buffered']
    #allocation4 [shape = 's32[1]{0}', space=sflag, size = 0x4, scoped, tag = 'scoped memory for tpu_custom_call.1']
    #allocation5 [shape = 's32[1]{0}', space=sflag, size = 0x4, scoped, tag = 'scoped memory for tpu_custom_call.1']
    #allocation6 [shape = 'u8[131072]{0}', space=vmem, size = 0x20000, scoped, tag = 'input window, operand 1, single buffered']
    #allocation7 [shape = 's32[1]{0}', space=sflag, size = 0x4, scoped, tag = 'scoped memory for tpu_custom_call.1']
    #allocation8 [shape = 'u8[65536]{0}', space=vmem, size = 0x10000, scoped, tag = 'input window, operand 2, single buffered']
    #allocation9 [shape = 'u8[8192]{0}', space=vmem, size = 0x2000, scoped, tag = 'output window, operand 0, single buffered']
    %8 = vsyncpa [#allocation4], 0
    %9 = vsyncpa [#allocation7], 0
    %10 = vsyncpa [#allocation5], 0
    // Predicated region
    $region2: #{tpu_custom_call.1} parent=1 // pred_check
      _
    $region3: #{tpu_custom_call.1} parent=1 // pred_check_branch
      %12 = sbr.rel (0) target = $region5
    $region4: #{tpu_custom_call.1} parent=1 // pred_region
      %s14 = ssub.s32 128, 128
      %15 = vsyncadd [#allocation4], %s14
      %s16 = sshll.u32 [#allocation3], 4
      %s17 = int_to_ptr.vmem [resolvable:$true] %s16
      %22 = dma.hbm_to_vmem [thread:$0]  %s0, 128, %s17, [#allocation4], 64, 64, 4
    $region5: #{tpu_custom_call.1} parent=1 // pred_fallthru
      _
    // Predicated region
    $region6: #{tpu_custom_call.1} parent=1 // pred_check
      _
    $region7: #{tpu_custom_call.1} parent=1 // pred_check_branch
      %24 = sbr.rel (0) target = $region9
    $region8: #{tpu_custom_call.1} parent=1 // pred_region
      %s25 = sadd.s32 0, 0
      %s26 = smul.u32 4, %s25
      %s28 = ssub.s32 4096, 4096
      %29 = vsyncadd [#allocation7], %s28
      %s30 = smul.addr %s26, 64
      %s31 = scalar_lea.hbm %s1, %s30
      %s32 = sshll.u32 [#allocation6], 4
      %s33 = int_to_ptr.vmem [resolvable:$true] %s32
      %38 = dma.hbm_to_vmem [thread:$0]  %s31, 4096, %s33, [#allocation7], 256, 256, 16
    $region9: #{tpu_custom_call.1} parent=1 // pred_fallthru
      _
    // Predicated region
    $region10: #{tpu_custom_call.1} parent=1 // pred_check
      _
    $region11: #{tpu_custom_call.1} parent=1 // pred_check_branch
      %40 = sbr.rel (0) target = $region13
    $region12: #{tpu_custom_call.1} parent=1 // pred_region
      %s41 = sadd.s32 0, 0
      %s42 = smul.u32 32, %s41
      %s44 = ssub.s32 2048, 2048
      %45 = vsyncadd [#allocation7], %s44
      %s46 = smul.addr %s42, 64
      %s47 = scalar_lea.hbm %s2, %s46
      %s48 = sshll.u32 [#allocation8], 4
      %s49 = int_to_ptr.vmem [resolvable:$true] %s48
      %54 = dma.hbm_to_vmem [thread:$0]  %s47, 2048, %s49, [#allocation7], 64, 64, 4
    $region13: #{tpu_custom_call.1} parent=1 // pred_fallthru
      _
    // Predicated region
    $region14: #{tpu_custom_call.1} parent=1 // pred_check
      _
    $region15: #{tpu_custom_call.1} parent=1 // pred_check_branch
      %56 = sbr.rel (0) target = $region17
    $region16: #{tpu_custom_call.1} parent=1 // pred_region
      %57 = dma.done [#allocation4], 128
    $region17: #{tpu_custom_call.1} parent=1 // pred_fallthru
      _
    // Predicated region
    $region18: #{tpu_custom_call.1} parent=1 // pred_check
      _
    $region19: #{tpu_custom_call.1} parent=1 // pred_check_branch
      %59 = sbr.rel (0) target = $region21
    $region20: #{tpu_custom_call.1} parent=1 // pred_region
      %60 = dma.done [#allocation7], 4096
    $region21: #{tpu_custom_call.1} parent=1 // pred_fallthru
      _
    // Predicated region
    $region22: #{tpu_custom_call.1} parent=1 // pred_check
      _
    $region23: #{tpu_custom_call.1} parent=1 // pred_check_branch
      %62 = sbr.rel (0) target = $region25
    $region24: #{tpu_custom_call.1} parent=1 // pred_region
      %63 = dma.done [#allocation7], 2048
    $region25: #{tpu_custom_call.1} parent=1 // pred_fallthru
      _
    %s64 = sadd.s32 0, 0
    %s65 = smul.u32 4, %s64
    %s66 = sadd.s32 0, 0
    %s67 = smul.u32 32, %s66
    %p69 = scmp.eq.s32.totalorder 0, 0
    // Predicated region
    $region26: #{tpu_custom_call.1} parent=1 // pred_check
      %p70 = pneg %p69
    $region27: #{tpu_custom_call.1} parent=1 // pred_check_branch
      %72 = sbr.rel (%p70) target = $region29
    $region28: #{tpu_custom_call.1} parent=1 // pred_region
      %73 = vst [vmem:[#allocation2] sm:$0xff] 0.0
      %74 = vst [vmem:[#allocation2 + $0x8] sm:$0xff] 0.0
    $region29: #{tpu_custom_call.1} parent=1 // pred_fallthru
      _
    %v75 = vld [vmem:[#allocation3] sm:$0xf]
    %v76 = vld [vmem:[#allocation3 + $0x4] sm:$0xf]
    %v77 = vld [vmem:[#allocation6] sm:$0xff]
    %v78 = vld [vmem:[#allocation6 + $0x8] sm:$0xff]
    %v79 = vld [vmem:[#allocation6 + $0x10] sm:$0xff]
    %v80 = vld [vmem:[#allocation6 + $0x18] sm:$0xff]
    %v81 = vld [vmem:[#allocation6 + $0x20] sm:$0xff]
    %v82 = vld [vmem:[#allocation6 + $0x28] sm:$0xff]
    %v83 = vld [vmem:[#allocation6 + $0x30] sm:$0xff]
    %v84 = vld [vmem:[#allocation6 + $0x38] sm:$0xff]
    %v85 = vld [vmem:[#allocation6 + $0x40] sm:$0xff]
    %v86 = vld [vmem:[#allocation6 + $0x48] sm:$0xff]
    %v87 = vld [vmem:[#allocation6 + $0x50] sm:$0xff]
    %v88 = vld [vmem:[#allocation6 + $0x58] sm:$0xff]
    %v89 = vld [vmem:[#allocation6 + $0x60] sm:$0xff]
    %v90 = vld [vmem:[#allocation6 + $0x68] sm:$0xff]
    %v91 = vld [vmem:[#allocation6 + $0x70] sm:$0xff]
    %v92 = vld [vmem:[#allocation6 + $0x78] sm:$0xff]
    %v93 = vld [vmem:[#allocation6 + $0x80] sm:$0xff]
    %v94 = vld [vmem:[#allocation6 + $0x88] sm:$0xff]
    %v95 = vld [vmem:[#allocation6 + $0x90] sm:$0xff]
    %v96 = vld [vmem:[#allocation6 + $0x98] sm:$0xff]
    %v97 = vld [vmem:[#allocation6 + $0xa0] sm:$0xff]
    %v98 = vld [vmem:[#allocation6 + $0xa8] sm:$0xff]
    %v99 = vld [vmem:[#allocation6 + $0xb0] sm:$0xff]
    %v100 = vld [vmem:[#allocation6 + $0xb8] sm:$0xff]
    %v101 = vld [vmem:[#allocation6 + $0xc0] sm:$0xff]
    %v102 = vld [vmem:[#allocation6 + $0xc8] sm:$0xff]
    %v103 = vld [vmem:[#allocation6 + $0xd0] sm:$0xff]
    %v104 = vld [vmem:[#allocation6 + $0xd8] sm:$0xff]
    %v105 = vld [vmem:[#allocation6 + $0xe0] sm:$0xff]
    %v106 = vld [vmem:[#allocation6 + $0xe8] sm:$0xff]
    %v107 = vld [vmem:[#allocation6 + $0xf0] sm:$0xff]
    %v108 = vld [vmem:[#allocation6 + $0xf8] sm:$0xff]
    %v111 = vunpack.c.l.b16 %v75
    %v112 = vunpack.c.l.b16 %v76
    %v113 = vpack.c.b16 %v112, %v111
    %v147 = vunpack.c.l.b16 %v77
    %v148 = vunpack.c.h.b16 %v77
    %v149 = vunpack.c.l.b16 %v78
    %v150 = vunpack.c.h.b16 %v78
    %v151 = vunpack.c.l.b16 %v79
    %v152 = vunpack.c.h.b16 %v79
    %v153 = vunpack.c.l.b16 %v80
    %v154 = vunpack.c.h.b16 %v80
    %v155 = vunpack.c.l.b16 %v81
    %v156 = vunpack.c.h.b16 %v81
    %v157 = vunpack.c.l.b16 %v82
    %v158 = vunpack.c.h.b16 %v82
    %v159 = vunpack.c.l.b16 %v83
    %v160 = vunpack.c.h.b16 %v83
    %v161 = vunpack.c.l.b16 %v84
    %v162 = vunpack.c.h.b16 %v84
    %v163 = vunpack.c.l.b16 %v85
    %v164 = vunpack.c.h.b16 %v85
    %v165 = vunpack.c.l.b16 %v86
    %v166 = vunpack.c.h.b16 %v86
    %v167 = vunpack.c.l.b16 %v87
    %v168 = vunpack.c.h.b16 %v87
    %v169 = vunpack.c.l.b16 %v88
    %v170 = vunpack.c.h.b16 %v88
    %v171 = vunpack.c.l.b16 %v89
    %v172 = vunpack.c.h.b16 %v89
    %v173 = vunpack.c.l.b16 %v90
    %v174 = vunpack.c.h.b16 %v90
    %v175 = vunpack.c.l.b16 %v91
    %v176 = vunpack.c.h.b16 %v91
    %v177 = vunpack.c.l.b16 %v92
    %v178 = vunpack.c.h.b16 %v92
    %v179 = vunpack.c.l.b16 %v93
    %v180 = vunpack.c.h.b16 %v93
    %v181 = vunpack.c.l.b16 %v94
    %v182 = vunpack.c.h.b16 %v94
    %v183 = vunpack.c.l.b16 %v95
    %v184 = vunpack.c.h.b16 %v95
    %v185 = vunpack.c.l.b16 %v96
    %v186 = vunpack.c.h.b16 %v96
    %v187 = vunpack.c.l.b16 %v97
    %v188 = vunpack.c.h.b16 %v97
    %v189 = vunpack.c.l.b16 %v98
    %v190 = vunpack.c.h.b16 %v98
    %v191 = vunpack.c.l.b16 %v99
    %v192 = vunpack.c.h.b16 %v99
    %v193 = vunpack.c.l.b16 %v100
    %v194 = vunpack.c.h.b16 %v100
    %v195 = vunpack.c.l.b16 %v101
    %v196 = vunpack.c.h.b16 %v101
    %v197 = vunpack.c.l.b16 %v102
    %v198 = vunpack.c.h.b16 %v102
    %v199 = vunpack.c.l.b16 %v103
    %v200 = vunpack.c.h.b16 %v103
    %v201 = vunpack.c.l.b16 %v104
    %v202 = vunpack.c.h.b16 %v104
    %v203 = vunpack.c.l.b16 %v105
    %v204 = vunpack.c.h.b16 %v105
    %v205 = vunpack.c.l.b16 %v106
    %v206 = vunpack.c.h.b16 %v106
    %v207 = vunpack.c.l.b16 %v107
    %v208 = vunpack.c.h.b16 %v107
    %v209 = vunpack.c.l.b16 %v108
    %v210 = vunpack.c.h.b16 %v108
    %v211 = vpack.c.b16 %v151, %v147
    %v212 = vpack.c.b16 %v152, %v148
    %v213 = vpack.c.b16 %v153, %v149
    %v214 = vpack.c.b16 %v154, %v150
    %v215 = vpack.c.b16 %v159, %v155
    %v216 = vpack.c.b16 %v160, %v156
    %v217 = vpack.c.b16 %v161, %v157
    %v218 = vpack.c.b16 %v162, %v158
    %v219 = vpack.c.b16 %v167, %v163
    %v220 = vpack.c.b16 %v168, %v164
    %v221 = vpack.c.b16 %v169, %v165
    %v222 = vpack.c.b16 %v170, %v166
    %v223 = vpack.c.b16 %v175, %v171
    %v224 = vpack.c.b16 %v176, %v172
    %v225 = vpack.c.b16 %v177, %v173
    %v226 = vpack.c.b16 %v178, %v174
    %v227 = vpack.c.b16 %v183, %v179
    %v228 = vpack.c.b16 %v184, %v180
    %v229 = vpack.c.b16 %v185, %v181
    %v230 = vpack.c.b16 %v186, %v182
    %v231 = vpack.c.b16 %v191, %v187
    %v232 = vpack.c.b16 %v192, %v188
    %v233 = vpack.c.b16 %v193, %v189
    %v234 = vpack.c.b16 %v194, %v190
    %v235 = vpack.c.b16 %v199, %v195
    %v236 = vpack.c.b16 %v200, %v196
    %v237 = vpack.c.b16 %v201, %v197
    %v238 = vpack.c.b16 %v202, %v198
    %v239 = vpack.c.b16 %v207, %v203
    %v240 = vpack.c.b16 %v208, %v204
    %v241 = vpack.c.b16 %v209, %v205
    %v242 = vpack.c.b16 %v210, %v206
    %275 = vmatprep.subr.bf16.mxu0 %v212
    %276 = vmatpush1.bf16.msra.mxu0 %v211
    %277 = vmatprep.subr.bf16.mxu0 %v216
    %278 = vmatpush1.bf16.msra.mxu0 %v215
    %279 = vmatprep.subr.bf16.mxu0 %v220
    %280 = vmatpush1.bf16.msra.mxu0 %v219
    %281 = vmatprep.subr.bf16.mxu0 %v224
    %282 = vmatpush1.bf16.msra.mxu0 %v223
    %283 = vmatprep.subr.bf16.mxu0 %v228
    %284 = vmatpush1.bf16.msra.mxu0 %v227
    %285 = vmatprep.subr.bf16.mxu0 %v232
    %286 = vmatpush1.bf16.msra.mxu0 %v231
    %287 = vmatprep.subr.bf16.mxu0 %v236
    %288 = vmatpush1.bf16.msra.mxu0 %v235
    %289 = vmatprep.subr.bf16.mxu0 %v240
    %290 = vmatpush1.bf16.msra.mxu0 %v239
    %291 = vmatprep.subr.bf16.mxu0 0
    %292 = vmatpush1.bf16.msra.mxu0 0
    %293 = vmatprep.subr.bf16.mxu0 0
    %294 = vmatpush1.bf16.msra.mxu0 0
    %295 = vmatprep.subr.bf16.mxu0 0
    %296 = vmatpush1.bf16.msra.mxu0 0
    %297 = vmatprep.subr.bf16.mxu0 0
    %298 = vmatpush1.bf16.msra.mxu0 0
    %299 = vmatprep.subr.bf16.mxu0 0
    %300 = vmatpush1.bf16.msra.mxu0 0
    %301 = vmatprep.subr.bf16.mxu0 0
    %302 = vmatpush1.bf16.msra.mxu0 0
    %303 = vmatprep.subr.bf16.mxu0 0
    %304 = vmatpush1.bf16.msra.mxu0 0
    %305 = vmatprep.subr.bf16.mxu0 0
    %306 = vmatpush1.bf16.msra.mxu0 0
    %307 = vmatprep.mubr.bf16.mxu0 0
    %308 = vmatmul.mubr.bf16.gmra.mrb[0].mxu0 %v113
    %v309 = vpop.f32.mrb[0].mxu0
    %v310 = vadd.f32 0.0, %v309
    %v311 = vpop.f32.mrb[0].mxu0
    %v312 = vadd.f32 0.0, %v311
    %v313 = vpop.f32.mrb[0].mxu0
    %v314 = vadd.f32 0.0, %v313
    %v315 = vpop.f32.mrb[0].mxu0
    %v316 = vadd.f32 0.0, %v315
    %317 = vdwg.mxu0
    %318 = vmatprep.subr.bf16.mxu0 %v214
    %319 = vmatpush1.bf16.msra.mxu0 %v213
    %320 = vmatprep.subr.bf16.mxu0 %v218
    %321 = vmatpush1.bf16.msra.mxu0 %v217
    %322 = vmatprep.subr.bf16.mxu0 %v222
    %323 = vmatpush1.bf16.msra.mxu0 %v221
    %324 = vmatprep.subr.bf16.mxu0 %v226
    %325 = vmatpush1.bf16.msra.mxu0 %v225
    %326 = vmatprep.subr.bf16.mxu0 %v230
    %327 = vmatpush1.bf16.msra.mxu0 %v229
    %328 = vmatprep.subr.bf16.mxu0 %v234
    %329 = vmatpush1.bf16.msra.mxu0 %v233
    %330 = vmatprep.subr.bf16.mxu0 %v238
    %331 = vmatpush1.bf16.msra.mxu0 %v237
    %332 = vmatprep.subr.bf16.mxu0 %v242
    %333 = vmatpush1.bf16.msra.mxu0 %v241
    %334 = vmatprep.subr.bf16.mxu0 0
    %335 = vmatpush1.bf16.msra.mxu0 0
    %336 = vmatprep.subr.bf16.mxu0 0
    %337 = vmatpush1.bf16.msra.mxu0 0
    %338 = vmatprep.subr.bf16.mxu0 0
    %339 = vmatpush1.bf16.msra.mxu0 0
    %340 = vmatprep.subr.bf16.mxu0 0
    %341 = vmatpush1.bf16.msra.mxu0 0
    %342 = vmatprep.subr.bf16.mxu0 0
    %343 = vmatpush1.bf16.msra.mxu0 0
    %344 = vmatprep.subr.bf16.mxu0 0
    %345 = vmatpush1.bf16.msra.mxu0 0
    %346 = vmatprep.subr.bf16.mxu0 0
    %347 = vmatpush1.bf16.msra.mxu0 0
    %348 = vmatprep.subr.bf16.mxu0 0
    %349 = vmatpush1.bf16.msra.mxu0 0
    %350 = vmatprep.mubr.bf16.mxu0 0
    %351 = vmatmul.mubr.bf16.gmra.mrb[0].mxu0 %v113
    %v352 = vpop.f32.mrb[0].mxu0
    %v353 = vadd.f32 0.0, %v352
    %v354 = vpop.f32.mrb[0].mxu0
    %v355 = vadd.f32 0.0, %v354
    %v356 = vpop.f32.mrb[0].mxu0
    %v357 = vadd.f32 0.0, %v356
    %v358 = vpop.f32.mrb[0].mxu0
    %v359 = vadd.f32 0.0, %v358
    %360 = vdwg.mxu0
    %v361 = vxor.u32 %v310, 2147483648
    %v362 = vxor.u32 %v312, 2147483648
    %v363 = vxor.u32 %v314, 2147483648
    %v364 = vxor.u32 %v316, 2147483648
    %v365 = vmul.f32 %v361, 1.442695
    %v366 = vpow.pop %v365
    %v367 = vmul.f32 %v362, 1.442695
    %v368 = vpow.pop %v367
    %v369 = vmul.f32 %v363, 1.442695
    %v370 = vpow.pop %v369
    %v371 = vmul.f32 %v364, 1.442695
    %v372 = vpow.pop %v371
    %v373 = vadd.f32 %v366, 1.0
    %v374 = vadd.f32 %v368, 1.0
    %v375 = vadd.f32 %v370, 1.0
    %v376 = vadd.f32 %v372, 1.0
    %v377 = vrcp.pop %v373
    %v378 = vmul.f32 1.0, %v377
    %v379 = vrcp.pop %v374
    %v380 = vmul.f32 1.0, %v379
    %v381 = vrcp.pop %v375
    %v382 = vmul.f32 1.0, %v381
    %v383 = vrcp.pop %v376
    %v384 = vmul.f32 1.0, %v383
    %v385 = vmul.f32 %v310, %v378
    %v386 = vmul.f32 %v312, %v380
    %v387 = vmul.f32 %v314, %v382
    %v388 = vmul.f32 %v316, %v384
    %v389 = vmul.f32 %v385, %v353
    %v390 = vmul.f32 %v386, %v355
    %v391 = vmul.f32 %v387, %v357
    %v392 = vmul.f32 %v388, %v359
    %v393 = vld [vmem:[#allocation2] sm:$0xff]
    %v394 = vld [vmem:[#allocation2 + $0x8] sm:$0xff]
    %v395 = vpack.c.bf16 %v391, %v389
    %v396 = vpack.c.bf16 %v392, %v390
    %v397 = vld [vmem:[#allocation8] sm:$0xf]
    %v398 = vld [vmem:[#allocation8 + $0x4] sm:$0xf]
    %v399 = vld [vmem:[#allocation8 + $0x8] sm:$0xf]
    %v400 = vld [vmem:[#allocation8 + $0xc] sm:$0xf]
    %v401 = vld [vmem:[#allocation8 + $0x10] sm:$0xf]
    %v402 = vld [vmem:[#allocation8 + $0x14] sm:$0xf]
    %v403 = vld [vmem:[#allocation8 + $0x18] sm:$0xf]
    %v404 = vld [vmem:[#allocation8 + $0x1c] sm:$0xf]
    %v405 = vld [vmem:[#allocation8 + $0x20] sm:$0xf]
    %v406 = vld [vmem:[#allocation8 + $0x24] sm:$0xf]
    %v407 = vld [vmem:[#allocation8 + $0x28] sm:$0xf]
    %v408 = vld [vmem:[#allocation8 + $0x2c] sm:$0xf]
    %v409 = vld [vmem:[#allocation8 + $0x30] sm:$0xf]
    %v410 = vld [vmem:[#allocation8 + $0x34] sm:$0xf]
    %v411 = vld [vmem:[#allocation8 + $0x38] sm:$0xf]
    %v412 = vld [vmem:[#allocation8 + $0x3c] sm:$0xf]
    %v413 = vld [vmem:[#allocation8 + $0x40] sm:$0xf]
    %v414 = vld [vmem:[#allocation8 + $0x44] sm:$0xf]
    %v415 = vld [vmem:[#allocation8 + $0x48] sm:$0xf]
    %v416 = vld [vmem:[#allocation8 + $0x4c] sm:$0xf]
    %v417 = vld [vmem:[#allocation8 + $0x50] sm:$0xf]
    %v418 = vld [vmem:[#allocation8 + $0x54] sm:$0xf]
    %v419 = vld [vmem:[#allocation8 + $0x58] sm:$0xf]
    %v420 = vld [vmem:[#allocation8 + $0x5c] sm:$0xf]
    %v421 = vld [vmem:[#allocation8 + $0x60] sm:$0xf]
    %v422 = vld [vmem:[#allocation8 + $0x64] sm:$0xf]
    %v423 = vld [vmem:[#allocation8 + $0x68] sm:$0xf]
    %v424 = vld [vmem:[#allocation8 + $0x6c] sm:$0xf]
    %v425 = vld [vmem:[#allocation8 + $0x70] sm:$0xf]
    %v426 = vld [vmem:[#allocation8 + $0x74] sm:$0xf]
    %v427 = vld [vmem:[#allocation8 + $0x78] sm:$0xf]
    %v428 = vld [vmem:[#allocation8 + $0x7c] sm:$0xf]
    %v461 = vunpack.c.l.b16 %v397
    %v462 = vunpack.c.l.b16 %v398
    %v463 = vunpack.c.l.b16 %v399
    %v464 = vunpack.c.l.b16 %v400
    %v465 = vunpack.c.l.b16 %v401
    %v466 = vunpack.c.l.b16 %v402
    %v467 = vunpack.c.l.b16 %v403
    %v468 = vunpack.c.l.b16 %v404
    %v469 = vunpack.c.l.b16 %v405
    %v470 = vunpack.c.l.b16 %v406
    %v471 = vunpack.c.l.b16 %v407
    %v472 = vunpack.c.l.b16 %v408
    %v473 = vunpack.c.l.b16 %v409
    %v474 = vunpack.c.l.b16 %v410
    %v475 = vunpack.c.l.b16 %v411
    %v476 = vunpack.c.l.b16 %v412
    %v477 = vunpack.c.l.b16 %v413
    %v478 = vunpack.c.l.b16 %v414
    %v479 = vunpack.c.l.b16 %v415
    %v480 = vunpack.c.l.b16 %v416
    %v481 = vunpack.c.l.b16 %v417
    %v482 = vunpack.c.l.b16 %v418
    %v483 = vunpack.c.l.b16 %v419
    %v484 = vunpack.c.l.b16 %v420
    %v485 = vunpack.c.l.b16 %v421
    %v486 = vunpack.c.l.b16 %v422
    %v487 = vunpack.c.l.b16 %v423
    %v488 = vunpack.c.l.b16 %v424
    %v489 = vunpack.c.l.b16 %v425
    %v490 = vunpack.c.l.b16 %v426
    %v491 = vunpack.c.l.b16 %v427
    %v492 = vunpack.c.l.b16 %v428
    %v493 = vpack.c.b16 %v462, %v461
    %v494 = vpack.c.b16 %v464, %v463
    %v495 = vpack.c.b16 %v466, %v465
    %v496 = vpack.c.b16 %v468, %v467
    %v497 = vpack.c.b16 %v470, %v469
    %v498 = vpack.c.b16 %v472, %v471
    %v499 = vpack.c.b16 %v474, %v473
    %v500 = vpack.c.b16 %v476, %v475
    %v501 = vpack.c.b16 %v478, %v477
    %v502 = vpack.c.b16 %v480, %v479
    %v503 = vpack.c.b16 %v482, %v481
    %v504 = vpack.c.b16 %v484, %v483
    %v505 = vpack.c.b16 %v486, %v485
    %v506 = vpack.c.b16 %v488, %v487
    %v507 = vpack.c.b16 %v490, %v489
    %v508 = vpack.c.b16 %v492, %v491
    %525 = vmatprep.subr.bf16.mxu0 0
    %526 = vmatpush1.bf16.msra.mxu0 %v493
    %527 = vmatprep.subr.bf16.mxu0 0
    %528 = vmatpush1.bf16.msra.mxu0 %v494
    %529 = vmatprep.subr.bf16.mxu0 0
    %530 = vmatpush1.bf16.msra.mxu0 %v495
    %531 = vmatprep.subr.bf16.mxu0 0
    %532 = vmatpush1.bf16.msra.mxu0 %v496
    %533 = vmatprep.subr.bf16.mxu0 0
    %534 = vmatpush1.bf16.msra.mxu0 %v497
    %535 = vmatprep.subr.bf16.mxu0 0
    %536 = vmatpush1.bf16.msra.mxu0 %v498
    %537 = vmatprep.subr.bf16.mxu0 0
    %538 = vmatpush1.bf16.msra.mxu0 %v499
    %539 = vmatprep.subr.bf16.mxu0 0
    %540 = vmatpush1.bf16.msra.mxu0 %v500
    %541 = vmatprep.subr.bf16.mxu0 0
    %542 = vmatpush1.bf16.msra.mxu0 %v501
    %543 = vmatprep.subr.bf16.mxu0 0
    %544 = vmatpush1.bf16.msra.mxu0 %v502
    %545 = vmatprep.subr.bf16.mxu0 0
    %546 = vmatpush1.bf16.msra.mxu0 %v503
    %547 = vmatprep.subr.bf16.mxu0 0
    %548 = vmatpush1.bf16.msra.mxu0 %v504
    %549 = vmatprep.subr.bf16.mxu0 0
    %550 = vmatpush1.bf16.msra.mxu0 %v505
    %551 = vmatprep.subr.bf16.mxu0 0
    %552 = vmatpush1.bf16.msra.mxu0 %v506
    %553 = vmatprep.subr.bf16.mxu0 0
    %554 = vmatpush1.bf16.msra.mxu0 %v507
    %555 = vmatprep.subr.bf16.mxu0 0
    %556 = vmatpush1.bf16.msra.mxu0 %v508
    %557 = vmatprep.mubr.bf16.mxu0 %v396
    %558 = vmatmul.mubr.bf16.gmra.mrb[0].mxu0 %v395
    %v559 = vpop.f32.mrb[0].mxu0
    %v560 = vadd.f32 0.0, %v559
    %v561 = vpop.f32.mrb[0].mxu0
    %v562 = vpop.f32.mrb[0].mxu0
    %v563 = vadd.f32 0.0, %v562
    %v564 = vpop.f32.mrb[0].mxu0
    %565 = vdwg.mxu0
    %v566 = vadd.f32 %v393, %v560
    %v567 = vadd.f32 %v394, %v563
    %568 = vst [vmem:[#allocation2] sm:$0xff] %v566
    %569 = vst [vmem:[#allocation2 + $0x8] sm:$0xff] %v567
    // Predicated region
    $region30: #{tpu_custom_call.1} parent=1 // pred_check
      %p570 = pneg %p69
    $region31: #{tpu_custom_call.1} parent=1 // pred_check_branch
      %572 = sbr.rel (%p570) target = $region33
    $region32: #{tpu_custom_call.1} parent=1 // pred_region
      %v573 = vld [vmem:[#allocation2] sm:$0xff]
      %v574 = vld [vmem:[#allocation2 + $0x8] sm:$0xff]
      %575 = vst [vmem:[#allocation9] sm:$0xff] %v573
      %576 = vst [vmem:[#allocation9 + $0x8] sm:$0xff] %v574
    $region33: #{tpu_custom_call.1} parent=1 // pred_fallthru
      _
    // Predicated region
    $region34: #{tpu_custom_call.1} parent=1 // pred_check
      _
    $region35: #{tpu_custom_call.1} parent=1 // pred_check_branch
      %578 = sbr.rel (0) target = $region37
    $region36: #{tpu_custom_call.1} parent=1 // pred_region
      %s580 = ssub.s32 256, 256
      %581 = vsyncadd [#allocation5], %s580
      %s582 = sshll.u32 [#allocation9], 4
      %s583 = int_to_ptr.vmem [resolvable:$true] %s582
      %588 = dma.vmem_to_hbm [thread:$0]  %s583, 256, %s3, [#allocation5], 128, 128, 8
    $region37: #{tpu_custom_call.1} parent=1 // pred_fallthru
      _
    // Predicated region
    $region38: #{tpu_custom_call.1} parent=1 // pred_check
      _
    $region39: #{tpu_custom_call.1} parent=1 // pred_check_branch
      %590 = sbr.rel (0) target = $region41
    $region40: #{tpu_custom_call.1} parent=1 // pred_region
      %591 = dma.done [#allocation5], 256
    $region41: #{tpu_custom_call.1} parent=1 // pred_fallthru
      _
    %592 = vsyncpa [#allocation4], 1
    %593 = vsyncpa [#allocation7], 1
    %594 = vsyncpa [#allocation5], 1

</llo_original>
